<compile_context>
chip_gen: v7x
topology: tpu7x:2x2x1
jax: 0.10.0
libtpu: 0.0.40
codegen_flags: <defaults>
</compile_context>

<pallas_src>
import jax
import jax.numpy as jnp
from jax.experimental import pallas as pl
from jax.experimental.pallas import tpu as pltpu

_LANE = 128
_SUBLANE_ALIGN = 32  # compatible with f32 (8,128), bf16 (16,128), int8/fp8 (32,128)


def _copy_kernel(x_ref, o_ref):
    # Forward pass of Generator: return x unchanged (tile-wise copy).
    o_ref[...] = x_ref[...]


def _block_budget():
    """Generation-aware (block_target_bytes, vmem_limit_bytes_or_None)."""
    try:
        vmem = pltpu.get_tpu_info().vmem_capacity_bytes
    except Exception:
        vmem = None
    if vmem is not None and vmem >= 100 * 1024 * 1024:
        # v5e / v6e: 128 MiB physical VMEM -> 8 MiB blocks, raise scoped limit.
        return 8 * 1024 * 1024, 64 * 1024 * 1024
    # v7x (64 MiB physical) or unknown chip: stay at 4 MiB blocks, default limit.
    return 4 * 1024 * 1024, None


def _pallas_identity_copy(x: jax.Array) -> jax.Array:
    """Explicit Pallas copy implementing Generator.forward (identity)."""
    n = x.size
    if n == 0:
        return x

    dtype = x.dtype
    itemsize = jnp.dtype(dtype).itemsize
    block_bytes, vmem_limit = _block_budget()

    cp_kwargs = dict(dimension_semantics=("parallel",))
    if vmem_limit is not None:
        cp_kwargs["vmem_limit_bytes"] = vmem_limit
    compiler_params = pltpu.CompilerParams(**cp_kwargs)

    if n % _LANE == 0:
        # Lane-dense path: contiguous row-major reshape is a bitcast, no copy.
        width = _LANE
        for w in (4096, 2048, 1024, 512, 256):
            if n % w == 0:
                width = w
                break
        rows = n // width
        x2d = x.reshape(rows, width)

        tb = max(1, block_bytes // (width * itemsize))
        if tb >= rows:
            tb = rows  # single full-array block
        else:
            tb = max(_SUBLANE_ALIGN, (tb // _SUBLANE_ALIGN) * _SUBLANE_ALIGN)

        y2d = pl.pallas_call(
            _copy_kernel,
            out_shape=jax.ShapeDtypeStruct((rows, width), dtype),
            grid=(pl.cdiv(rows, tb),),
            in_specs=[pl.BlockSpec((tb, width), lambda i: (i, 0))],
            out_specs=pl.BlockSpec((tb, width), lambda i: (i, 0)),
            # Callers that donate x at their jit boundary get true in-place reuse.
            input_output_aliases={0: 0},
            compiler_params=compiler_params,
        )(x2d)
        return y2d.reshape(x.shape)

    # Ragged path (element count not a multiple of 128): no pad / slice.
    # Collapse to 2-D with the full trailing extent as the block's last dim
    # (a block equal to the full array dim is always legal); tile only the
    # leading dim.  The final partial row-tile is handled by masked stores.
    lead = x.shape[0] if x.ndim >= 2 else 1
    rest = n // max(lead, 1)
    x2d = x.reshape(lead, rest)

    tb = max(1, block_bytes // max(rest * itemsize, 1))
    if tb >= lead:
        tb = lead  # full-array block
    else:
        tb = max(8, (tb // 8) * 8)  # second-to-last dim: multiple of 8

    y2d = pl.pallas_call(
        _copy_kernel,
        out_shape=jax.ShapeDtypeStruct((lead, rest), dtype),
        grid=(pl.cdiv(lead, tb),),
        in_specs=[pl.BlockSpec((tb, rest), lambda i: (i, 0))],
        out_specs=pl.BlockSpec((tb, rest), lambda i: (i, 0)),
        input_output_aliases={0: 0},
        compiler_params=compiler_params,
    )(x2d)
    return y2d.reshape(x.shape)


def generator_forward(x: jax.Array, *, force_pallas: bool = False) -> jax.Array:
    """Pallas TPU implementation of Generator.forward (identity).

    The forward pass is `return x`, so by default no kernel is launched and no
    HBM traffic is paid (the review's highest-value optimization).  Set
    force_pallas=True to route through the explicit Pallas copy kernel when a
    materialized copy of the input is actually required.
    """
    if not force_pallas:
        return x
    return _pallas_identity_copy(x)


if __name__ == "__main__":
    # Generator(z_dim=100) defines no submodules/parameters; forward is identity.
    # TODO(synk): weight_init iterates an empty self._modules, so it is a no-op
    # and has no Pallas equivalent.
    key = jax.random.PRNGKey(0)
    batch, z_dim = 2, 100
    x = jax.random.normal(key, (batch, z_dim), dtype=jnp.float32)

    # Default (fast) path: identity short-circuit, no kernel launch.
    y_fast = generator_forward(x)
    assert y_fast.shape == x.shape and y_fast.dtype == x.dtype
    assert bool(jnp.all(y_fast == x))

    # Explicit Pallas kernel, ragged path (200 elements, not 128-aligned).
    y = generator_forward(x, force_pallas=True)
    jax.block_until_ready(y)
    assert y.shape == x.shape and y.dtype == x.dtype
    assert bool(jnp.all(y == x))

    # Explicit Pallas kernel, lane-dense path (element count % 128 == 0).
    x2 = jax.random.normal(jax.random.PRNGKey(0), (2, 128), dtype=jnp.float32)
    y2 = generator_forward(x2, force_pallas=True)
    jax.block_until_ready(y2)
    assert y2.shape == x2.shape and y2.dtype == x2.dtype
    assert bool(jnp.all(y2 == x2))

    print("KERNEL_OK")
</pallas_src>

<mosaic_0001>
module attributes {stable_mosaic.version = 11 : i64} {
  func.func @_copy_kernel(%arg0: i32, %arg1: memref<2x100xf32, #tpu.memory_space<vmem>>, %arg2: memref<2x100xf32, #tpu.memory_space<vmem>>) attributes {dimension_semantics = [#tpu.dimension_semantics<parallel>], iteration_bounds = array<i64: 1>, scalar_prefetch = 0 : i64, scratch_operands = 0 : i64, tpu.core_type = #tpu.core_type<tc>, window_params = [{transform_indices = @transform_0, window_bounds = array<i64: 2, 100>}, {transform_indices = @transform_1, window_bounds = array<i64: 2, 100>}]} {
    %c0 = arith.constant 0 : index
    %c0_0 = arith.constant 0 : index
    %0 = vector.load %arg1[%c0, %c0_0] : memref<2x100xf32, #tpu.memory_space<vmem>>, vector<2x100xf32>
    %c0_1 = arith.constant 0 : index
    %c0_2 = arith.constant 0 : index
    %1 = vector.load %arg2[%c0_1, %c0_2] : memref<2x100xf32, #tpu.memory_space<vmem>>, vector<2x100xf32>
    tpu.vector_store %arg2[%c0_1, %c0_2], %0 {strides = array<i32>} : memref<2x100xf32, #tpu.memory_space<vmem>>, vector<2x100xf32>,
    return
  }
  func.func @transform_0(%arg0: i32) -> (i32, i32) {
    %c0_i32 = arith.constant 0 : i32
    %c0_i32_0 = arith.constant 0 : i32
    return %arg0, %c0_i32 : i32, i32
  }
  func.func @transform_1(%arg0: i32) -> (i32, i32) {
    %c0_i32 = arith.constant 0 : i32
    %c0_i32_0 = arith.constant 0 : i32
    return %arg0, %c0_i32 : i32, i32
  }
}

</mosaic_0001>

<llo_original>
// kernel: tpu_custom_call.1
$region0: #{tpu_custom_call.1}
  #allocation0 [shape = 'u32[]', space=smem, size = 0x4, offset = 0x4, fixed_abs, tag = 'smem constant byte address 0x4 - core index']
  #allocation1 [shape = 'u32[144,128]{1,0:T(1,128)}', space=vmem, size = 0x12000, scoped, tag = 'internal scratch']
  %s0 = inlined_call_operand.hbm [shape: f32[2,100], index: 0, kind: input, shape index: {}, may-alias: {0,1}]
  %s1 = inlined_call_operand.hbm [shape: f32[2,100], index: 1, kind: output, shape index: {}, may-alias: {0,1}]
  %s2 = sld [smem:[#allocation0]]
  $region18: #{tpu_custom_call.1} parent=0
    _
  %s4 = ssub.s32 1, %s2
  %s5 = scalar_select 0, %s4, %s2
  $region1: #{tpu_custom_call.1} parent=0
    #allocation2 [shape = 'u8[1024]{0}', space=vmem, size = 0x400, scoped, tag = 'input window, operand 0, single buffered']
    #allocation3 [shape = 's32[1]{0}', space=sflag, size = 0x4, scoped, tag = 'scoped memory for tpu_custom_call.1']
    #allocation4 [shape = 's32[1]{0}', space=sflag, size = 0x4, scoped, tag = 'scoped memory for tpu_custom_call.1']
    #allocation5 [shape = 'u8[1024]{0}', space=vmem, size = 0x400, scoped, tag = 'output window, operand 0, single buffered']
    %6 = vsyncpa [#allocation3], 0
    %7 = vsyncpa [#allocation4], 0
    // Predicated region
    $region2: #{tpu_custom_call.1} parent=1 // pred_check
      _
    $region3: #{tpu_custom_call.1} parent=1 // pred_check_branch
      %9 = sbr.rel (0) target = $region5
    $region4: #{tpu_custom_call.1} parent=1 // pred_region
      %s11 = ssub.s32 32, 32
      %12 = vsyncadd [#allocation3], %s11
      %s14 = sshll.u32 [#allocation2], 4
      %s15 = int_to_ptr.vmem [resolvable:$true] %s14
      %17 = dma.hbm_to_vmem [thread:$0]  %s0, 32, %s15, [#allocation3]
    $region5: #{tpu_custom_call.1} parent=1 // pred_fallthru
      _
    // Predicated region
    $region6: #{tpu_custom_call.1} parent=1 // pred_check
      _
    $region7: #{tpu_custom_call.1} parent=1 // pred_check_branch
      %19 = sbr.rel (0) target = $region9
    $region8: #{tpu_custom_call.1} parent=1 // pred_region
      %20 = dma.done [#allocation3], 32
    $region9: #{tpu_custom_call.1} parent=1 // pred_fallthru
      _
    %v21 = vld [vmem:[#allocation2] sm:$0x3]
    %vm22 = vcmask 812032
    %23 = vst.msk [vmem:[#allocation5] sm:$0x3] %vm22, %v21
    // Predicated region
    $region10: #{tpu_custom_call.1} parent=1 // pred_check
      _
    $region11: #{tpu_custom_call.1} parent=1 // pred_check_branch
      %25 = sbr.rel (0) target = $region13
    $region12: #{tpu_custom_call.1} parent=1 // pred_region
      %s27 = ssub.s32 32, 32
      %28 = vsyncadd [#allocation4], %s27
      %s30 = sshll.u32 [#allocation5], 4
      %s31 = int_to_ptr.vmem [resolvable:$true] %s30
      %33 = dma.vmem_to_hbm [thread:$0]  %s31, 32, %s1, [#allocation4]
    $region13: #{tpu_custom_call.1} parent=1 // pred_fallthru
      _
    // Predicated region
    $region14: #{tpu_custom_call.1} parent=1 // pred_check
      _
    $region15: #{tpu_custom_call.1} parent=1 // pred_check_branch
      %35 = sbr.rel (0) target = $region17
    $region16: #{tpu_custom_call.1} parent=1 // pred_region
      %36 = dma.done [#allocation4], 32
    $region17: #{tpu_custom_call.1} parent=1 // pred_fallthru
      _
    %37 = vsyncpa [#allocation3], 1
    %38 = vsyncpa [#allocation4], 1

</llo_original>
